<compile_context>
chip_gen: v7x
topology: tpu7x:2x2x1
jax: 0.10.0
libtpu: 0.0.40
codegen_flags: <defaults>
</compile_context>

<pallas_src>
import math
import functools

import jax
import jax.numpy as jnp
from jax.experimental import pallas as pl
from jax.experimental.pallas import tpu as pltpu

INITIAL_SIZE = 96
FEATURE_SIZE = 256


def _round_up(n, m):
    return ((n + m - 1) // m) * m


def _choose_tile(B, tile_batch):
    """Pick (tile_rows, padded_batch).

    Prefers tiles that divide the (8-rounded) batch exactly so no batch-padding
    copy of x is ever materialized; otherwise bounds pad waste to <= 12.5%.
    For batches > 256 rows the tile is capped at ceil(B/2) so the grid has at
    least 2 steps (keeps both v7x TensorCores busy; harmless on v5e/v6e).
    """
    B8 = _round_up(B, 8)
    if B8 <= 256:
        return B8, B8  # single tile; tiny batches gain nothing from splitting
    cap = max(8, min(_round_up(tile_batch, 8), _round_up(-(-B8 // 2), 8)))
    ladder = [t for t in (1024, 512, 384, 256, 192, 128, 96, 64, 32, 16, 8) if t <= cap]
    # 1) Largest tile that divides B8 exactly (no padding, no copy of x).
    for t in ladder:
        if t >= 128 and B8 % t == 0:
            return t, B8
    # 2) Largest tile whose zero-pad waste stays <= 1/8 of the padded batch.
    for t in ladder:
        b_pad = _round_up(B8, t)
        if (b_pad - B8) * 8 <= b_pad:
            return t, b_pad
    t = ladder[0]
    return t, _round_up(B8, t)


def _mlp_kernel(x_ref, w1_ref, b1_ref, w2_ref, b2_ref, o_ref):
    # x_ref:  (TB, 96)    f32  (cast to bf16 in-register; no external pad/cast pass)
    # w1_ref: (96, 256)   bf16
    # b1_ref: (1, 256)    f32
    # w2_ref: (256, 256)  bf16
    # b2_ref: (1, 256)    f32
    # o_ref:  (TB, 256)   out_dtype (f32 by default)
    x = x_ref[...].astype(jnp.bfloat16)
    h = jnp.dot(x, w1_ref[...], preferred_element_type=jnp.float32)
    h = h + b1_ref[...]
    # swish(h) = h * sigmoid(h); approx reciprocal keeps the divide on the EUP slot.
    # (exp(-h) overflow for very negative h -> recip gives 0 -> h*0 = 0, matching saturation.)
    h = h * pl.reciprocal(1.0 + jnp.exp(-h), approx=True)
    out = jnp.dot(h.astype(jnp.bfloat16), w2_ref[...], preferred_element_type=jnp.float32)
    o_ref[...] = (out + b2_ref[...]).astype(o_ref.dtype)


def prepare_params(w1_t, b1, w2_t, b2):
    """One-time parameter prep (hoisted out of the per-call path).

    Weights (stored pre-transposed as (in, out)) are cast to bf16 for the MXU;
    biases are reshaped to (1, 256) f32 rows. Do this once at init, not per call.
    """
    return (
        jnp.asarray(w1_t, jnp.bfloat16),
        jnp.asarray(b1, jnp.float32).reshape(1, FEATURE_SIZE),
        jnp.asarray(w2_t, jnp.bfloat16),
        jnp.asarray(b2, jnp.float32).reshape(1, FEATURE_SIZE),
    )


@functools.partial(jax.jit, static_argnames=("tile_batch", "out_dtype"))
def state_vector_features(x, w1_bf16, b1_2d, w2_bf16, b2_2d, *,
                          tile_batch=512, out_dtype=jnp.float32):
    """x: (B, 96) f32. Params from prepare_params(). Returns (B, 256) out_dtype."""
    B, D_in = x.shape
    assert D_in == INITIAL_SIZE

    tb, B_pad = _choose_tile(B, tile_batch)
    if B_pad != B:
        # Only ragged batches (no exactly-dividing tile) pay this one f32 copy;
        # the tile ladder keeps waste <= 12.5% and avoids it for common sizes.
        x = jnp.pad(x, ((0, B_pad - B), (0, 0)))

    out = pl.pallas_call(
        _mlp_kernel,
        out_shape=jax.ShapeDtypeStruct((B_pad, FEATURE_SIZE), out_dtype),
        grid_spec=pltpu.PrefetchScalarGridSpec(
            num_scalar_prefetch=0,
            grid=(B_pad // tb,),
            in_specs=[
                pl.BlockSpec((tb, INITIAL_SIZE), lambda i: (i, 0)),
                pl.BlockSpec((INITIAL_SIZE, FEATURE_SIZE), lambda i: (0, 0)),
                pl.BlockSpec((1, FEATURE_SIZE), lambda i: (0, 0)),
                pl.BlockSpec((FEATURE_SIZE, FEATURE_SIZE), lambda i: (0, 0)),
                pl.BlockSpec((1, FEATURE_SIZE), lambda i: (0, 0)),
            ],
            out_specs=pl.BlockSpec((tb, FEATURE_SIZE), lambda i: (i, 0)),
        ),
        compiler_params=pltpu.CompilerParams(
            dimension_semantics=("parallel",),
        ),
    )(x, w1_bf16, b1_2d, w2_bf16, b2_2d)

    if B_pad != B:
        out = out[:B]
    return out


def init_params(key):
    """Deterministic init mimicking torch.nn.Linear default U[-1/sqrt(fan_in), 1/sqrt(fan_in)]."""
    k1, k2, k3, k4 = jax.random.split(key, 4)
    bound1 = 1.0 / math.sqrt(INITIAL_SIZE)
    bound2 = 1.0 / math.sqrt(FEATURE_SIZE)
    # Stored pre-transposed: (in_features, out_features)
    w1_t = jax.random.uniform(k1, (INITIAL_SIZE, FEATURE_SIZE), jnp.float32, -bound1, bound1)
    b1 = jax.random.uniform(k2, (FEATURE_SIZE,), jnp.float32, -bound1, bound1)
    w2_t = jax.random.uniform(k3, (FEATURE_SIZE, FEATURE_SIZE), jnp.float32, -bound2, bound2)
    b2 = jax.random.uniform(k4, (FEATURE_SIZE,), jnp.float32, -bound2, bound2)
    return w1_t, b1, w2_t, b2


def _reference(x, w1_t, b1, w2_t, b2):
    h = x @ w1_t + b1
    h = h * jax.nn.sigmoid(h)
    return h @ w2_t + b2


if __name__ == "__main__":
    key = jax.random.PRNGKey(0)
    kx, kp = jax.random.split(key)
    w1_t, b1, w2_t, b2 = init_params(kp)
    params = prepare_params(w1_t, b1, w2_t, b2)

    def check(B, seed):
        x = jax.random.normal(jax.random.PRNGKey(seed), (B, INITIAL_SIZE), jnp.float32)
        out = jax.block_until_ready(state_vector_features(x, *params))
        ref = _reference(x, w1_t, b1, w2_t, b2)
        assert out.shape == (B, FEATURE_SIZE)
        # bf16 MXU inputs + approx reciprocal -> modest tolerance vs f32 reference
        assert jnp.allclose(out, ref, atol=2e-2, rtol=2e-2), f"mismatch vs reference (B={B})"

    check(8, 0)     # small, divisible batch (single tile)
    check(5, 1)     # ragged tiny batch (pads to one 8-row tile)
    check(384, 2)   # multi-step grid path (tb=192, grid=2, no padding copy)

    print("KERNEL_OK")
</pallas_src>

<mosaic_0001>
module attributes {stable_mosaic.version = 11 : i64} {
  func.func @_mlp_kernel(%arg0: i32, %arg1: memref<8x96xf32, #tpu.memory_space<vmem>>, %arg2: memref<96x256xbf16, #tpu.memory_space<vmem>>, %arg3: memref<1x256xf32, #tpu.memory_space<vmem>>, %arg4: memref<256x256xbf16, #tpu.memory_space<vmem>>, %arg5: memref<1x256xf32, #tpu.memory_space<vmem>>, %arg6: memref<8x256xf32, #tpu.memory_space<vmem>>) attributes {dimension_semantics = [#tpu.dimension_semantics<parallel>], iteration_bounds = array<i64: 1>, scalar_prefetch = 0 : i64, scratch_operands = 0 : i64, tpu.core_type = #tpu.core_type<tc>, window_params = [{transform_indices = @transform_0, window_bounds = array<i64: 8, 96>}, {pipeline_mode = #tpu.pipeline_mode<synchronous>, transform_indices = @transform_1, window_bounds = array<i64: 96, 256>}, {pipeline_mode = #tpu.pipeline_mode<synchronous>, transform_indices = @transform_2, window_bounds = array<i64: 1, 256>}, {pipeline_mode = #tpu.pipeline_mode<synchronous>, transform_indices = @transform_3, window_bounds = array<i64: 256, 256>}, {pipeline_mode = #tpu.pipeline_mode<synchronous>, transform_indices = @transform_4, window_bounds = array<i64: 1, 256>}, {transform_indices = @transform_5, window_bounds = array<i64: 8, 256>}]} {
    %c0 = arith.constant 0 : index
    %c0_0 = arith.constant 0 : index
    %0 = vector.load %arg1[%c0, %c0_0] : memref<8x96xf32, #tpu.memory_space<vmem>>, vector<8x96xf32>
    %1 = arith.truncf %0 : vector<8x96xf32> to vector<8x96xbf16>
    %c0_1 = arith.constant 0 : index
    %c0_2 = arith.constant 0 : index
    %2 = vector.load %arg2[%c0_1, %c0_2] : memref<96x256xbf16, #tpu.memory_space<vmem>>, vector<96x256xbf16>
    %cst = arith.constant dense<0.000000e+00> : vector<8x256xf32>
    %3 = tpu.matmul %1, %2, %cst {dimension_numbers = #tpu.dot_dimension_numbers<[1], [0], [0], [1], [0, 0, 1, 1], [], []>} : vector<8x96xbf16>, vector<96x256xbf16>, vector<8x256xf32> -> vector<8x256xf32>
    %c0_3 = arith.constant 0 : index
    %c0_4 = arith.constant 0 : index
    %4 = vector.load %arg3[%c0_3, %c0_4] : memref<1x256xf32, #tpu.memory_space<vmem>>, vector<1x256xf32>
    %5 = vector.broadcast %4 : vector<1x256xf32> to vector<8x256xf32>
    %6 = arith.addf %3, %5 : vector<8x256xf32>
    %cst_5 = arith.constant 0.000000e+00 : f32
    %7 = vector.broadcast %cst_5 : f32 to vector<8x256xf32>
    %8 = arith.subf %7, %6 : vector<8x256xf32>
    %9 = math.exp %8 : vector<8x256xf32>
    %cst_6 = arith.constant 1.000000e+00 : f32
    %10 = vector.broadcast %cst_6 : f32 to vector<8x256xf32>
    %11 = arith.addf %10, %9 : vector<8x256xf32>
    %12 = tpu.reciprocal %11 {approx = true} : vector<8x256xf32> -> vector<8x256xf32>
    %13 = arith.mulf %6, %12 : vector<8x256xf32>
    %14 = arith.truncf %13 : vector<8x256xf32> to vector<8x256xbf16>
    %c0_7 = arith.constant 0 : index
    %c0_8 = arith.constant 0 : index
    %15 = vector.load %arg4[%c0_7, %c0_8] : memref<256x256xbf16, #tpu.memory_space<vmem>>, vector<256x256xbf16>
    %cst_9 = arith.constant dense<0.000000e+00> : vector<8x256xf32>
    %16 = tpu.matmul %14, %15, %cst_9 {dimension_numbers = #tpu.dot_dimension_numbers<[1], [0], [0], [1], [0, 0, 1, 1], [], []>} : vector<8x256xbf16>, vector<256x256xbf16>, vector<8x256xf32> -> vector<8x256xf32>
    %c0_10 = arith.constant 0 : index
    %c0_11 = arith.constant 0 : index
    %17 = vector.load %arg5[%c0_10, %c0_11] : memref<1x256xf32, #tpu.memory_space<vmem>>, vector<1x256xf32>
    %18 = vector.broadcast %17 : vector<1x256xf32> to vector<8x256xf32>
    %19 = arith.addf %16, %18 : vector<8x256xf32>
    %c0_12 = arith.constant 0 : index
    %c0_13 = arith.constant 0 : index
    %20 = vector.load %arg6[%c0_12, %c0_13] : memref<8x256xf32, #tpu.memory_space<vmem>>, vector<8x256xf32>
    tpu.vector_store %arg6[%c0_12, %c0_13], %19 {strides = array<i32>} : memref<8x256xf32, #tpu.memory_space<vmem>>, vector<8x256xf32>,
    return
  }
  func.func @transform_0(%arg0: i32) -> (i32, i32) {
    %c0_i32 = arith.constant 0 : i32
    %c0_i32_0 = arith.constant 0 : i32
    return %arg0, %c0_i32 : i32, i32
  }
  func.func @transform_1(%arg0: i32) -> (i32, i32) {
    %c0_i32 = arith.constant 0 : i32
    %c0_i32_0 = arith.constant 0 : i32
    %c0_i32_1 = arith.constant 0 : i32
    return %c0_i32, %c0_i32_0 : i32, i32
  }
  func.func @transform_2(%arg0: i32) -> (i32, i32) {
    %c0_i32 = arith.constant 0 : i32
    %c0_i32_0 = arith.constant 0 : i32
    %c0_i32_1 = arith.constant 0 : i32
    return %c0_i32, %c0_i32_0 : i32, i32
  }
  func.func @transform_3(%arg0: i32) -> (i32, i32) {
    %c0_i32 = arith.constant 0 : i32
    %c0_i32_0 = arith.constant 0 : i32
    %c0_i32_1 = arith.constant 0 : i32
    return %c0_i32, %c0_i32_0 : i32, i32
  }
  func.func @transform_4(%arg0: i32) -> (i32, i32) {
    %c0_i32 = arith.constant 0 : i32
    %c0_i32_0 = arith.constant 0 : i32
    %c0_i32_1 = arith.constant 0 : i32
    return %c0_i32, %c0_i32_0 : i32, i32
  }
  func.func @transform_5(%arg0: i32) -> (i32, i32) {
    %c0_i32 = arith.constant 0 : i32
    %c0_i32_0 = arith.constant 0 : i32
    return %arg0, %c0_i32 : i32, i32
  }
}

</mosaic_0001>

<llo_original>
// kernel: state_vector_features.1
$region0: #{state_vector_features.1}
  #allocation0 [shape = 'u32[]', space=smem, size = 0x4, offset = 0x4, fixed_abs, tag = 'smem constant byte address 0x4 - core index']
  #allocation1 [shape = 'u32[144,128]{1,0:T(1,128)}', space=vmem, size = 0x12000, scoped, tag = 'internal scratch']
  %s0 = inlined_call_operand.hbm [shape: f32[8,96], index: 0, kind: input, shape index: {}]
  %s1 = inlined_call_operand.hbm [shape: bf16[96,256], index: 1, kind: input, shape index: {}]
  %s2 = inlined_call_operand.vmem [shape: f32[1,256], index: 2, kind: input, shape index: {}]
  %s3 = inlined_call_operand.hbm [shape: bf16[256,256], index: 3, kind: input, shape index: {}]
  %s4 = inlined_call_operand.vmem [shape: f32[1,256], index: 4, kind: input, shape index: {}]
  %s5 = inlined_call_operand.hbm [shape: f32[8,256], index: 5, kind: output, shape index: {}]
  %s6 = sld [smem:[#allocation0]]
  $region42: #{state_vector_features.1} parent=0
    _
  %s8 = ssub.s32 1, %s6
  %s9 = scalar_select 0, %s8, %s6
  $region1: #{state_vector_features.1} parent=0
    #allocation2 [shape = 'u8[4096]{0}', space=vmem, size = 0x1000, scoped, tag = 'input window, operand 0, single buffered']
    #allocation3 [shape = 's32[1]{0}', space=sflag, size = 0x4, scoped, tag = 'scoped memory for state_vector_features.1']
    #allocation4 [shape = 's32[1]{0}', space=sflag, size = 0x4, scoped, tag = 'scoped memory for state_vector_features.1']
    #allocation5 [shape = 'u8[49152]{0}', space=vmem, size = 0xc000, scoped, tag = 'input window, operand 1, single buffered']
    #allocation6 [shape = 's32[1]{0}', space=sflag, size = 0x4, scoped, tag = 'scoped memory for state_vector_features.1']
    #allocation7 [shape = 'u8[131072]{0}', space=vmem, size = 0x20000, scoped, tag = 'input window, operand 3, single buffered']
    #allocation8 [shape = 'u8[8192]{0}', space=vmem, size = 0x2000, scoped, tag = 'output window, operand 0, single buffered']
    %10 = vsyncpa [#allocation3], 0
    %11 = vsyncpa [#allocation6], 0
    %12 = vsyncpa [#allocation4], 0
    // Predicated region
    $region2: #{state_vector_features.1} parent=1 // pred_check
      _
    $region3: #{state_vector_features.1} parent=1 // pred_check_branch
      %14 = sbr.rel (0) target = $region5
    $region4: #{state_vector_features.1} parent=1 // pred_region
      %s16 = ssub.s32 128, 128
      %17 = vsyncadd [#allocation3], %s16
      %s19 = sshll.u32 [#allocation2], 4
      %s20 = int_to_ptr.vmem [resolvable:$true] %s19
      %22 = dma.hbm_to_vmem [thread:$0]  %s0, 128, %s20, [#allocation3]
    $region5: #{state_vector_features.1} parent=1 // pred_fallthru
      _
    // Predicated region
    $region6: #{state_vector_features.1} parent=1 // pred_check
      _
    $region7: #{state_vector_features.1} parent=1 // pred_check_branch
      %24 = sbr.rel (0) target = $region9
    $region8: #{state_vector_features.1} parent=1 // pred_region
      %s26 = ssub.s32 1536, 1536
      %27 = vsyncadd [#allocation6], %s26
      %s28 = sshll.u32 [#allocation5], 4
      %s29 = int_to_ptr.vmem [resolvable:$true] %s28
      %34 = dma.hbm_to_vmem [thread:$0]  %s1, 1536, %s29, [#allocation6], 128, 128, 8
    $region9: #{state_vector_features.1} parent=1 // pred_fallthru
      _
    // Predicated region
    $region10: #{state_vector_features.1} parent=1 // pred_check
      _
    $region11: #{state_vector_features.1} parent=1 // pred_check_branch
      %36 = sbr.rel (0) target = $region13
    $region12: #{state_vector_features.1} parent=1 // pred_region
      _
    $region13: #{state_vector_features.1} parent=1 // pred_fallthru
      _
    // Predicated region
    $region14: #{state_vector_features.1} parent=1 // pred_check
      _
    $region15: #{state_vector_features.1} parent=1 // pred_check_branch
      %38 = sbr.rel (0) target = $region17
    $region16: #{state_vector_features.1} parent=1 // pred_region
      %s40 = ssub.s32 4096, 4096
      %41 = vsyncadd [#allocation6], %s40
      %s42 = sshll.u32 [#allocation7], 4
      %s43 = int_to_ptr.vmem [resolvable:$true] %s42
      %48 = dma.hbm_to_vmem [thread:$0]  %s3, 4096, %s43, [#allocation6], 128, 128, 8
    $region17: #{state_vector_features.1} parent=1 // pred_fallthru
      _
    // Predicated region
    $region18: #{state_vector_features.1} parent=1 // pred_check
      _
    $region19: #{state_vector_features.1} parent=1 // pred_check_branch
      %50 = sbr.rel (0) target = $region21
    $region20: #{state_vector_features.1} parent=1 // pred_region
      _
    $region21: #{state_vector_features.1} parent=1 // pred_fallthru
      _
    // Predicated region
    $region22: #{state_vector_features.1} parent=1 // pred_check
      _
    $region23: #{state_vector_features.1} parent=1 // pred_check_branch
      %52 = sbr.rel (0) target = $region25
    $region24: #{state_vector_features.1} parent=1 // pred_region
      %53 = dma.done [#allocation3], 128
    $region25: #{state_vector_features.1} parent=1 // pred_fallthru
      _
    // Predicated region
    $region26: #{state_vector_features.1} parent=1 // pred_check
      _
    $region27: #{state_vector_features.1} parent=1 // pred_check_branch
      %55 = sbr.rel (0) target = $region29
    $region28: #{state_vector_features.1} parent=1 // pred_region
      %56 = dma.done [#allocation6], 1536
    $region29: #{state_vector_features.1} parent=1 // pred_fallthru
      _
    // Predicated region
    $region30: #{state_vector_features.1} parent=1 // pred_check
      _
    $region31: #{state_vector_features.1} parent=1 // pred_check_branch
      %58 = sbr.rel (0) target = $region33
    $region32: #{state_vector_features.1} parent=1 // pred_region
      %59 = dma.done [#allocation6], 4096
    $region33: #{state_vector_features.1} parent=1 // pred_fallthru
      _
    %v61 = vld [vmem:[#allocation2] sm:$0xff]
    %v62 = vpack.c.bf16 %v61, %v61
    %v63 = vld [vmem:[#allocation5] sm:$0xff]
    %v64 = vld [vmem:[#allocation5 + $0x8] sm:$0xff]
    %v65 = vld [vmem:[#allocation5 + $0x10] sm:$0xff]
    %v66 = vld [vmem:[#allocation5 + $0x18] sm:$0xff]
    %v67 = vld [vmem:[#allocation5 + $0x20] sm:$0xff]
    %v68 = vld [vmem:[#allocation5 + $0x28] sm:$0xff]
    %v69 = vld [vmem:[#allocation5 + $0x30] sm:$0xff]
    %v70 = vld [vmem:[#allocation5 + $0x38] sm:$0xff]
    %v71 = vld [vmem:[#allocation5 + $0x40] sm:$0xff]
    %v72 = vld [vmem:[#allocation5 + $0x48] sm:$0xff]
    %v73 = vld [vmem:[#allocation5 + $0x50] sm:$0xff]
    %v74 = vld [vmem:[#allocation5 + $0x58] sm:$0xff]
    %v75 = vld [vmem:[%s2] sm:$0x3]
    %v77 = vlaneseq
    %v78 = vshrl.u32 %v77, 7
    %v79 = vsub.s32 0, %v78
    %v80 = vrot.slane %v75, %v79
    %v81 = vlaneseq
    %v82 = vshrl.u32 %v81, 7
    %v83 = vsub.s32 1, %v82
    %v84 = vrot.slane %v75, %v83
    %v99 = vunpack.c.l.b16 %v63
    %v100 = vunpack.c.h.b16 %v63
    %v101 = vunpack.c.l.b16 %v64
    %v102 = vunpack.c.h.b16 %v64
    %v103 = vunpack.c.l.b16 %v65
    %v104 = vunpack.c.h.b16 %v65
    %v105 = vunpack.c.l.b16 %v66
    %v106 = vunpack.c.h.b16 %v66
    %v107 = vunpack.c.l.b16 %v67
    %v108 = vunpack.c.h.b16 %v67
    %v109 = vunpack.c.l.b16 %v68
    %v110 = vunpack.c.h.b16 %v68
    %v111 = vunpack.c.l.b16 %v69
    %v112 = vunpack.c.h.b16 %v69
    %v113 = vunpack.c.l.b16 %v70
    %v114 = vunpack.c.h.b16 %v70
    %v115 = vunpack.c.l.b16 %v71
    %v116 = vunpack.c.h.b16 %v71
    %v117 = vunpack.c.l.b16 %v72
    %v118 = vunpack.c.h.b16 %v72
    %v119 = vunpack.c.l.b16 %v73
    %v120 = vunpack.c.h.b16 %v73
    %v121 = vunpack.c.l.b16 %v74
    %v122 = vunpack.c.h.b16 %v74
    %v123 = vpack.c.b16 %v101, %v99
    %v124 = vpack.c.b16 %v102, %v100
    %v125 = vpack.c.b16 %v105, %v103
    %v126 = vpack.c.b16 %v106, %v104
    %v127 = vpack.c.b16 %v109, %v107
    %v128 = vpack.c.b16 %v110, %v108
    %v129 = vpack.c.b16 %v113, %v111
    %v130 = vpack.c.b16 %v114, %v112
    %v131 = vpack.c.b16 %v117, %v115
    %v132 = vpack.c.b16 %v118, %v116
    %v133 = vpack.c.b16 %v121, %v119
    %v134 = vpack.c.b16 %v122, %v120
    %vm147 = vcmask 785408
    %v149 = vsel %vm147, %v62, 0
    %151 = vmatprep.subr.bf16.mxu0 %v124
    %152 = vmatpush1.bf16.msra.mxu0 %v123
    %153 = vmatprep.subr.bf16.mxu0 %v126
    %154 = vmatpush1.bf16.msra.mxu0 %v125
    %155 = vmatprep.subr.bf16.mxu0 %v128
    %156 = vmatpush1.bf16.msra.mxu0 %v127
    %157 = vmatprep.subr.bf16.mxu0 %v130
    %158 = vmatpush1.bf16.msra.mxu0 %v129
    %159 = vmatprep.subr.bf16.mxu0 %v132
    %160 = vmatpush1.bf16.msra.mxu0 %v131
    %161 = vmatprep.subr.bf16.mxu0 %v134
    %162 = vmatpush1.bf16.msra.mxu0 %v133
    %163 = vmatprep.subr.bf16.mxu0 0
    %164 = vmatpush1.bf16.msra.mxu0 0
    %165 = vmatprep.subr.bf16.mxu0 0
    %166 = vmatpush1.bf16.msra.mxu0 0
    %167 = vmatprep.subr.bf16.mxu0 0
    %168 = vmatpush1.bf16.msra.mxu0 0
    %169 = vmatprep.subr.bf16.mxu0 0
    %170 = vmatpush1.bf16.msra.mxu0 0
    %171 = vmatprep.subr.bf16.mxu0 0
    %172 = vmatpush1.bf16.msra.mxu0 0
    %173 = vmatprep.subr.bf16.mxu0 0
    %174 = vmatpush1.bf16.msra.mxu0 0
    %175 = vmatprep.subr.bf16.mxu0 0
    %176 = vmatpush1.bf16.msra.mxu0 0
    %177 = vmatprep.subr.bf16.mxu0 0
    %178 = vmatpush1.bf16.msra.mxu0 0
    %179 = vmatprep.subr.bf16.mxu0 0
    %180 = vmatpush1.bf16.msra.mxu0 0
    %181 = vmatprep.subr.bf16.mxu0 0
    %182 = vmatpush1.bf16.msra.mxu0 0
    %183 = vmatprep.mubr.bf16.mxu0 0
    %184 = vmatmul.mubr.bf16.gmra.mrb[0].mxu0 %v149
    %v185 = vpop.f32.mrb[0].mxu0
    %v186 = vadd.f32 %v80, %v185
    %v187 = vpop.f32.mrb[0].mxu0
    %v188 = vadd.f32 %v84, %v187
    %v189 = vpop.f32.mrb[0].mxu0
    %v190 = vpop.f32.mrb[0].mxu0
    %191 = vdwg.mxu0
    %v192 = vsub.f32 0.0, %v186
    %v193 = vsub.f32 0.0, %v188
    %v194 = vmul.f32 %v192, 1.442695
    %v195 = vpow.pop %v194
    %v196 = vmul.f32 %v193, 1.442695
    %v197 = vpow.pop %v196
    %v198 = vadd.f32 %v195, 1.0
    %v199 = vadd.f32 %v197, 1.0
    %v200 = vrcp.pop %v198
    %v201 = vrcp.pop %v199
    %v202 = vmul.f32 %v186, %v200
    %v203 = vmul.f32 %v188, %v201
    %v204 = vpack.c.bf16 %v202, %v202
    %v205 = vpack.c.bf16 %v203, %v203
    %v206 = vld [vmem:[#allocation7] sm:$0xff]
    %v207 = vld [vmem:[#allocation7 + $0x8] sm:$0xff]
    %v208 = vld [vmem:[#allocation7 + $0x10] sm:$0xff]
    %v209 = vld [vmem:[#allocation7 + $0x18] sm:$0xff]
    %v210 = vld [vmem:[#allocation7 + $0x20] sm:$0xff]
    %v211 = vld [vmem:[#allocation7 + $0x28] sm:$0xff]
    %v212 = vld [vmem:[#allocation7 + $0x30] sm:$0xff]
    %v213 = vld [vmem:[#allocation7 + $0x38] sm:$0xff]
    %v214 = vld [vmem:[#allocation7 + $0x40] sm:$0xff]
    %v215 = vld [vmem:[#allocation7 + $0x48] sm:$0xff]
    %v216 = vld [vmem:[#allocation7 + $0x50] sm:$0xff]
    %v217 = vld [vmem:[#allocation7 + $0x58] sm:$0xff]
    %v218 = vld [vmem:[#allocation7 + $0x60] sm:$0xff]
    %v219 = vld [vmem:[#allocation7 + $0x68] sm:$0xff]
    %v220 = vld [vmem:[#allocation7 + $0x70] sm:$0xff]
    %v221 = vld [vmem:[#allocation7 + $0x78] sm:$0xff]
    %v222 = vld [vmem:[#allocation7 + $0x80] sm:$0xff]
    %v223 = vld [vmem:[#allocation7 + $0x88] sm:$0xff]
    %v224 = vld [vmem:[#allocation7 + $0x90] sm:$0xff]
    %v225 = vld [vmem:[#allocation7 + $0x98] sm:$0xff]
    %v226 = vld [vmem:[#allocation7 + $0xa0] sm:$0xff]
    %v227 = vld [vmem:[#allocation7 + $0xa8] sm:$0xff]
    %v228 = vld [vmem:[#allocation7 + $0xb0] sm:$0xff]
    %v229 = vld [vmem:[#allocation7 + $0xb8] sm:$0xff]
    %v230 = vld [vmem:[#allocation7 + $0xc0] sm:$0xff]
    %v231 = vld [vmem:[#allocation7 + $0xc8] sm:$0xff]
    %v232 = vld [vmem:[#allocation7 + $0xd0] sm:$0xff]
    %v233 = vld [vmem:[#allocation7 + $0xd8] sm:$0xff]
    %v234 = vld [vmem:[#allocation7 + $0xe0] sm:$0xff]
    %v235 = vld [vmem:[#allocation7 + $0xe8] sm:$0xff]
    %v236 = vld [vmem:[#allocation7 + $0xf0] sm:$0xff]
    %v237 = vld [vmem:[#allocation7 + $0xf8] sm:$0xff]
    %v238 = vld [vmem:[%s4] sm:$0x3]
    %v240 = vlaneseq
    %v241 = vshrl.u32 %v240, 7
    %v242 = vsub.s32 0, %v241
    %v243 = vrot.slane %v238, %v242
    %v244 = vlaneseq
    %v245 = vshrl.u32 %v244, 7
    %v246 = vsub.s32 1, %v245
    %v247 = vrot.slane %v238, %v246
    %v282 = vunpack.c.l.b16 %v206
    %v283 = vunpack.c.h.b16 %v206
    %v284 = vunpack.c.l.b16 %v207
    %v285 = vunpack.c.h.b16 %v207
    %v286 = vunpack.c.l.b16 %v208
    %v287 = vunpack.c.h.b16 %v208
    %v288 = vunpack.c.l.b16 %v209
    %v289 = vunpack.c.h.b16 %v209
    %v290 = vunpack.c.l.b16 %v210
    %v291 = vunpack.c.h.b16 %v210
    %v292 = vunpack.c.l.b16 %v211
    %v293 = vunpack.c.h.b16 %v211
    %v294 = vunpack.c.l.b16 %v212
    %v295 = vunpack.c.h.b16 %v212
    %v296 = vunpack.c.l.b16 %v213
    %v297 = vunpack.c.h.b16 %v213
    %v298 = vunpack.c.l.b16 %v214
    %v299 = vunpack.c.h.b16 %v214
    %v300 = vunpack.c.l.b16 %v215
    %v301 = vunpack.c.h.b16 %v215
    %v302 = vunpack.c.l.b16 %v216
    %v303 = vunpack.c.h.b16 %v216
    %v304 = vunpack.c.l.b16 %v217
    %v305 = vunpack.c.h.b16 %v217
    %v306 = vunpack.c.l.b16 %v218
    %v307 = vunpack.c.h.b16 %v218
    %v308 = vunpack.c.l.b16 %v219
    %v309 = vunpack.c.h.b16 %v219
    %v310 = vunpack.c.l.b16 %v220
    %v311 = vunpack.c.h.b16 %v220
    %v312 = vunpack.c.l.b16 %v221
    %v313 = vunpack.c.h.b16 %v221
    %v314 = vunpack.c.l.b16 %v222
    %v315 = vunpack.c.h.b16 %v222
    %v316 = vunpack.c.l.b16 %v223
    %v317 = vunpack.c.h.b16 %v223
    %v318 = vunpack.c.l.b16 %v224
    %v319 = vunpack.c.h.b16 %v224
    %v320 = vunpack.c.l.b16 %v225
    %v321 = vunpack.c.h.b16 %v225
    %v322 = vunpack.c.l.b16 %v226
    %v323 = vunpack.c.h.b16 %v226
    %v324 = vunpack.c.l.b16 %v227
    %v325 = vunpack.c.h.b16 %v227
    %v326 = vunpack.c.l.b16 %v228
    %v327 = vunpack.c.h.b16 %v228
    %v328 = vunpack.c.l.b16 %v229
    %v329 = vunpack.c.h.b16 %v229
    %v330 = vunpack.c.l.b16 %v230
    %v331 = vunpack.c.h.b16 %v230
    %v332 = vunpack.c.l.b16 %v231
    %v333 = vunpack.c.h.b16 %v231
    %v334 = vunpack.c.l.b16 %v232
    %v335 = vunpack.c.h.b16 %v232
    %v336 = vunpack.c.l.b16 %v233
    %v337 = vunpack.c.h.b16 %v233
    %v338 = vunpack.c.l.b16 %v234
    %v339 = vunpack.c.h.b16 %v234
    %v340 = vunpack.c.l.b16 %v235
    %v341 = vunpack.c.h.b16 %v235
    %v342 = vunpack.c.l.b16 %v236
    %v343 = vunpack.c.h.b16 %v236
    %v344 = vunpack.c.l.b16 %v237
    %v345 = vunpack.c.h.b16 %v237
    %v346 = vpack.c.b16 %v284, %v282
    %v347 = vpack.c.b16 %v285, %v283
    %v348 = vpack.c.b16 %v288, %v286
    %v349 = vpack.c.b16 %v289, %v287
    %v350 = vpack.c.b16 %v292, %v290
    %v351 = vpack.c.b16 %v293, %v291
    %v352 = vpack.c.b16 %v296, %v294
    %v353 = vpack.c.b16 %v297, %v295
    %v354 = vpack.c.b16 %v300, %v298
    %v355 = vpack.c.b16 %v301, %v299
    %v356 = vpack.c.b16 %v304, %v302
    %v357 = vpack.c.b16 %v305, %v303
    %v358 = vpack.c.b16 %v308, %v306
    %v359 = vpack.c.b16 %v309, %v307
    %v360 = vpack.c.b16 %v312, %v310
    %v361 = vpack.c.b16 %v313, %v311
    %v362 = vpack.c.b16 %v316, %v314
    %v363 = vpack.c.b16 %v317, %v315
    %v364 = vpack.c.b16 %v320, %v318
    %v365 = vpack.c.b16 %v321, %v319
    %v366 = vpack.c.b16 %v324, %v322
    %v367 = vpack.c.b16 %v325, %v323
    %v368 = vpack.c.b16 %v328, %v326
    %v369 = vpack.c.b16 %v329, %v327
    %v370 = vpack.c.b16 %v332, %v330
    %v371 = vpack.c.b16 %v333, %v331
    %v372 = vpack.c.b16 %v336, %v334
    %v373 = vpack.c.b16 %v337, %v335
    %v374 = vpack.c.b16 %v340, %v338
    %v375 = vpack.c.b16 %v341, %v339
    %v376 = vpack.c.b16 %v344, %v342
    %v377 = vpack.c.b16 %v345, %v343
    %410 = vmatprep.subr.bf16.mxu0 %v347
    %411 = vmatpush1.bf16.msra.mxu0 %v346
    %412 = vmatprep.subr.bf16.mxu0 %v349
    %413 = vmatpush1.bf16.msra.mxu0 %v348
    %414 = vmatprep.subr.bf16.mxu0 %v351
    %415 = vmatpush1.bf16.msra.mxu0 %v350
    %416 = vmatprep.subr.bf16.mxu0 %v353
    %417 = vmatpush1.bf16.msra.mxu0 %v352
    %418 = vmatprep.subr.bf16.mxu0 %v355
    %419 = vmatpush1.bf16.msra.mxu0 %v354
    %420 = vmatprep.subr.bf16.mxu0 %v357
    %421 = vmatpush1.bf16.msra.mxu0 %v356
    %422 = vmatprep.subr.bf16.mxu0 %v359
    %423 = vmatpush1.bf16.msra.mxu0 %v358
    %424 = vmatprep.subr.bf16.mxu0 %v361
    %425 = vmatpush1.bf16.msra.mxu0 %v360
    %426 = vmatprep.subr.bf16.mxu0 %v363
    %427 = vmatpush1.bf16.msra.mxu0 %v362
    %428 = vmatprep.subr.bf16.mxu0 %v365
    %429 = vmatpush1.bf16.msra.mxu0 %v364
    %430 = vmatprep.subr.bf16.mxu0 %v367
    %431 = vmatpush1.bf16.msra.mxu0 %v366
    %432 = vmatprep.subr.bf16.mxu0 %v369
    %433 = vmatpush1.bf16.msra.mxu0 %v368
    %434 = vmatprep.subr.bf16.mxu0 %v371
    %435 = vmatpush1.bf16.msra.mxu0 %v370
    %436 = vmatprep.subr.bf16.mxu0 %v373
    %437 = vmatpush1.bf16.msra.mxu0 %v372
    %438 = vmatprep.subr.bf16.mxu0 %v375
    %439 = vmatpush1.bf16.msra.mxu0 %v374
    %440 = vmatprep.subr.bf16.mxu0 %v377
    %441 = vmatpush1.bf16.msra.mxu0 %v376
    %442 = vmatprep.mubr.bf16.mxu0 %v205
    %443 = vmatmul.mubr.bf16.gmra.mrb[0].mxu0 %v204
    %v444 = vpop.f32.mrb[0].mxu0
    %v445 = vadd.f32 %v243, %v444
    %v446 = vpop.f32.mrb[0].mxu0
    %v447 = vadd.f32 %v247, %v446
    %v448 = vpop.f32.mrb[0].mxu0
    %v449 = vpop.f32.mrb[0].mxu0
    %450 = vdwg.mxu0
    %451 = vst [vmem:[#allocation8] sm:$0xff] %v445
    %452 = vst [vmem:[#allocation8 + $0x8] sm:$0xff] %v447
    // Predicated region
    $region34: #{state_vector_features.1} parent=1 // pred_check
      _
    $region35: #{state_vector_features.1} parent=1 // pred_check_branch
      %454 = sbr.rel (0) target = $region37
    $region36: #{state_vector_features.1} parent=1 // pred_region
      %s456 = ssub.s32 256, 256
      %457 = vsyncadd [#allocation4], %s456
      %s459 = sshll.u32 [#allocation8], 4
      %s460 = int_to_ptr.vmem [resolvable:$true] %s459
      %462 = dma.vmem_to_hbm [thread:$0]  %s460, 256, %s5, [#allocation4]
    $region37: #{state_vector_features.1} parent=1 // pred_fallthru
      _
    // Predicated region
    $region38: #{state_vector_features.1} parent=1 // pred_check
      _
    $region39: #{state_vector_features.1} parent=1 // pred_check_branch
      %464 = sbr.rel (0) target = $region41
    $region40: #{state_vector_features.1} parent=1 // pred_region
      %465 = dma.done [#allocation4], 256
    $region41: #{state_vector_features.1} parent=1 // pred_fallthru
      _
    %466 = vsyncpa [#allocation3], 1
    %467 = vsyncpa [#allocation6], 1
    %468 = vsyncpa [#allocation4], 1

</llo_original>
